<compile_context>
chip_gen: v7x
topology: tpu7x:2x2x1
jax: 0.10.0
libtpu: 0.0.40
codegen_flags: <defaults>
</compile_context>

<pallas_src>
import jax
import jax.numpy as jnp
from jax import lax
from jax.experimental import pallas as pl
from jax.experimental.pallas import tpu as pltpu


def _cdiv(a, b):
    return -(-a // b)


def _attn_pool_kernel(x_ref, lens_ref, w_ref, b_ref, o_ref):
    # x_ref:    VMEM (bt, T, D)  token embeddings (native dtype, e.g. bf16)
    # lens_ref: VMEM (bt, 1)     int32 valid lengths
    # w_ref:    VMEM (1, D)      scorer weight (lane-dense)
    # b_ref:    SMEM (1,)        scorer bias (scalar)
    # o_ref:    VMEM (bt, D)     pooled output
    x = x_ref[...]                                     # native dtype, no f32 copy
    w = w_ref[...].astype(jnp.float32)[None]           # (1, 1, D)
    bias = b_ref[0]

    # score = fc(x): element-wise multiply (promoted to f32) + lane reduce
    # over D.  No persistent (bt, T, D) f32 temp is bound; the compiler fuses
    # the upcast into the multiply/reduce.
    score = jnp.sum(x * w, axis=-1) + bias             # (bt, T) f32, lane-dense

    # Length mask: position t valid iff t < lens[row].  For rows beyond the
    # true batch (ragged last block) lens/x hold stale data; their outputs
    # are dropped by the masked edge store, so garbage there is harmless.
    pos = lax.broadcasted_iota(jnp.int32, score.shape, 1)       # (bt, T)
    score = jnp.where(pos < lens_ref[...], score, jnp.float32(-1e10))

    # Softmax over the sequence (lane) axis.
    m = jnp.max(score, axis=-1, keepdims=True)          # (bt, 1)
    e = jnp.exp(score - m)                               # (bt, T)
    denom = jnp.sum(e, axis=-1, keepdims=True)           # (bt, 1) >= 1
    weight = e / denom                                    # (bt, T) f32

    # Weighted sum over T on the VPU: D stays lane-dense, T reduces over
    # sublanes.  Avoids bt tiny M=1 MXU matmuls (v7x bottleneck).
    out = jnp.sum(x * weight[..., None], axis=1)          # (bt, D) f32
    o_ref[...] = out.astype(o_ref.dtype)


def _pick_b_tile(B, T, D, itemsize, target_bytes=4 << 20):
    """Rows per grid step: ~4 MiB of x per block, bt a multiple of 8 (or B)."""
    if B <= 8:
        return B
    per_row = max(1, T * D * itemsize)
    max_bt = (B // 8) * 8                       # largest multiple of 8 <= B
    bt = max(8, min(max_bt, (target_bytes // per_row) // 8 * 8))
    steps = _cdiv(B, bt)
    # Prefer an even number of grid steps (feeds both v7x TensorCores evenly),
    # but only if blocks stay >= ~1 MiB so we don't hurt the HBM roofline.
    if steps % 2 == 1:
        want = 2 if steps == 1 else steps + 1
        bt2 = max(8, ((_cdiv(B, want) + 7) // 8) * 8)
        if bt2 * per_row >= (1 << 20) and _cdiv(B, bt2) % 2 == 0:
            bt = bt2
    return bt


def attention_pooling(x, lens, w, b, b_tile=None):
    """x: (B, T, D) float, lens: (B,) int, w: (1, D), b: (1,) -> (B, D)."""
    B, T, D = x.shape
    itemsize = jnp.dtype(x.dtype).itemsize

    if b_tile is not None:
        bt = int(b_tile)
        if bt >= B or B <= 8:
            bt = B
        else:
            bt = max(8, (bt // 8) * 8)          # keep blocks 8-sublane aligned
    else:
        bt = _pick_b_tile(B, T, D, itemsize)

    steps = _cdiv(B, bt)                        # ragged last block is masked
                                                # in-kernel; no host-side pad

    lens_col = lens.astype(jnp.int32).reshape(B, 1)
    w_row = w.reshape(1, D).astype(jnp.float32)
    b_vec = b.reshape(1).astype(jnp.float32)

    # Explicit VMEM budget: double-buffered native-dtype x block plus f32
    # temporaries (always 4-byte regardless of input dtype) and output
    # buffers, clamped to 48 MiB so it stays safe on v7x's 64 MiB VMEM.
    blk_elems = bt * T * D
    x_blk = blk_elems * itemsize
    vmem_limit = 2 * x_blk + 4 * blk_elems * 4 + 4 * bt * D * 4 + (2 << 20)
    vmem_limit = int(min(max(vmem_limit, 24 << 20), 48 << 20))

    out = pl.pallas_call(
        _attn_pool_kernel,
        out_shape=jax.ShapeDtypeStruct((B, D), x.dtype),
        grid=(steps,),
        in_specs=[
            pl.BlockSpec((bt, T, D), lambda i: (i, 0, 0)),
            pl.BlockSpec((bt, 1), lambda i: (i, 0)),
            pl.BlockSpec((1, D), lambda i: (0, 0)),
            pl.BlockSpec(memory_space=pltpu.MemorySpace.SMEM),
        ],
        out_specs=pl.BlockSpec((bt, D), lambda i: (i, 0)),
        compiler_params=pltpu.CompilerParams(
            dimension_semantics=("parallel",),
            vmem_limit_bytes=vmem_limit),
    )(x, lens_col, w_row, b_vec)
    return out


def _reference(x, lens, w, b):
    xf = x.astype(jnp.float32)
    score = jnp.sum(xf * w.astype(jnp.float32)[None], axis=-1) + b[0]   # (B, T)
    T = x.shape[1]
    mask = jnp.arange(T)[None, :] < lens[:, None]
    score = jnp.where(mask, score, jnp.float32(-1e10))
    weight = jax.nn.softmax(score, axis=1)
    return jnp.sum(xf * weight[..., None], axis=1).astype(x.dtype)


if __name__ == "__main__":
    key = jax.random.PRNGKey(0)

    def run_case(B, T, D, lens_vals, b_tile=None, dtype=jnp.float32, tol=1e-5):
        kx, kw, kb = jax.random.split(jax.random.fold_in(key, B * 1000 + T), 3)
        x = jax.random.normal(kx, (B, T, D), dtype=jnp.float32).astype(dtype)
        lens = jnp.asarray(lens_vals, dtype=jnp.int32)
        # Deterministic init of nn.Linear(emb_dim, 1): weight (1, D), bias (1,)
        bound = 1.0 / (D ** 0.5)
        w = jax.random.uniform(kw, (1, D), minval=-bound, maxval=bound,
                               dtype=jnp.float32)
        b = jax.random.uniform(kb, (1,), minval=-bound, maxval=bound,
                               dtype=jnp.float32)

        out = jax.block_until_ready(attention_pooling(x, lens, w, b,
                                                      b_tile=b_tile))
        ref = _reference(x, lens, w, b)
        assert out.shape == (B, D)
        err = float(jnp.max(jnp.abs(out.astype(jnp.float32)
                                    - ref.astype(jnp.float32))))
        assert err < tol, f"max err {err}"

    # Small shape implied by the pooling head: batch=2, seq=8, hidden=32.
    run_case(2, 8, 32, [5, 8])
    # Ragged batch (B % bt != 0) handled in-kernel: no host-side padding copy.
    run_case(20, 16, 128, list(range(1, 17)) + [16, 3, 8, 12], b_tile=8)
    # bf16 inputs stay bf16 in VMEM (no full-block f32 upcast); auto tile pick.
    run_case(10, 16, 128, [3, 16, 1, 9, 12, 16, 2, 7, 5, 11],
             dtype=jnp.bfloat16, tol=3e-2)

    # TODO(synk): tokenization and the BERT transformer encoder of
    # SentenceTransformer are not translated; only the pooling head is.
    print("KERNEL_OK")
</pallas_src>

<mosaic_0001>
module attributes {stable_mosaic.version = 11 : i64} {
  func.func @_attn_pool_kernel(%arg0: i32, %arg1: memref<2x8x32xf32, #tpu.memory_space<vmem>>, %arg2: memref<2x1xi32, #tpu.memory_space<vmem>>, %arg3: memref<1x32xf32, #tpu.memory_space<vmem>>, %arg4: memref<1xf32, #tpu.memory_space<smem>>, %arg5: memref<2x32xf32, #tpu.memory_space<vmem>>) attributes {dimension_semantics = [#tpu.dimension_semantics<parallel>], iteration_bounds = array<i64: 1>, scalar_prefetch = 0 : i64, scratch_operands = 0 : i64, tpu.core_type = #tpu.core_type<tc>, window_params = [{transform_indices = @transform_0, window_bounds = array<i64: 2, 8, 32>}, {transform_indices = @transform_1, window_bounds = array<i64: 2, 1>}, {pipeline_mode = #tpu.pipeline_mode<synchronous>, transform_indices = @transform_2, window_bounds = array<i64: 1, 32>}, {transform_indices = @transform_3, window_bounds = array<i64: 1>}, {transform_indices = @transform_4, window_bounds = array<i64: 2, 32>}]} {
    %c0 = arith.constant 0 : index
    %c0_0 = arith.constant 0 : index
    %c0_1 = arith.constant 0 : index
    %0 = vector.load %arg1[%c0, %c0_0, %c0_1] : memref<2x8x32xf32, #tpu.memory_space<vmem>>, vector<2x8x32xf32>
    %c0_2 = arith.constant 0 : index
    %c0_3 = arith.constant 0 : index
    %1 = vector.load %arg3[%c0_2, %c0_3] : memref<1x32xf32, #tpu.memory_space<vmem>>, vector<1x32xf32>
    %2 = vector.shape_cast %1 : vector<1x32xf32> to vector<1x1x32xf32>
    %c0_4 = arith.constant 0 : index
    %3 = memref.load %arg4[%c0_4] : memref<1xf32, #tpu.memory_space<smem>>
    %4 = vector.broadcast %2 : vector<1x1x32xf32> to vector<2x8x32xf32>
    %5 = arith.mulf %0, %4 : vector<2x8x32xf32>
    %cst = arith.constant dense<0.000000e+00> : vector<2x8xf32>
    %6 = vector.multi_reduction <add>, %5, %cst [2] : vector<2x8x32xf32> to vector<2x8xf32>
    %7 = vector.broadcast %3 : f32 to vector<2x8xf32>
    %8 = arith.addf %6, %7 : vector<2x8xf32>
    %9 = tpu.iota {dimensions = array<i32: 1>} : vector<2x8xi32>
    %c0_5 = arith.constant 0 : index
    %c0_6 = arith.constant 0 : index
    %10 = vector.load %arg2[%c0_5, %c0_6] : memref<2x1xi32, #tpu.memory_space<vmem>>, vector<2x1xi32>
    %11 = vector.broadcast %10 : vector<2x1xi32> to vector<2x8xi32>
    %12 = arith.cmpi slt, %9, %11 : vector<2x8xi32>
    %cst_7 = arith.constant -1.000000e+10 : f32
    %13 = vector.broadcast %cst_7 : f32 to vector<2x8xf32>
    %14 = arith.select %12, %8, %13 : vector<2x8xi1>, vector<2x8xf32>
    %cst_8 = arith.constant dense<0xFF800000> : vector<2xf32>
    %15 = vector.multi_reduction <maximumf>, %14, %cst_8 [1] : vector<2x8xf32> to vector<2xf32>
    %16 = vector.shape_cast %15 : vector<2xf32> to vector<2x1xf32>
    %17 = vector.broadcast %16 : vector<2x1xf32> to vector<2x8xf32>
    %18 = arith.subf %14, %17 : vector<2x8xf32>
    %19 = math.exp %18 : vector<2x8xf32>
    %cst_9 = arith.constant dense<0.000000e+00> : vector<2xf32>
    %20 = vector.multi_reduction <add>, %19, %cst_9 [1] : vector<2x8xf32> to vector<2xf32>
    %21 = vector.shape_cast %20 : vector<2xf32> to vector<2x1xf32>
    %22 = vector.broadcast %21 : vector<2x1xf32> to vector<2x8xf32>
    %23 = arith.divf %19, %22 : vector<2x8xf32>
    %24 = vector.shape_cast %23 : vector<2x8xf32> to vector<2x8x1xf32>
    %25 = vector.broadcast %24 : vector<2x8x1xf32> to vector<2x8x32xf32>
    %26 = arith.mulf %0, %25 : vector<2x8x32xf32>
    %cst_10 = arith.constant dense<0.000000e+00> : vector<2x32xf32>
    %27 = vector.multi_reduction <add>, %26, %cst_10 [1] : vector<2x8x32xf32> to vector<2x32xf32>
    %c0_11 = arith.constant 0 : index
    %c0_12 = arith.constant 0 : index
    %28 = vector.load %arg5[%c0_11, %c0_12] : memref<2x32xf32, #tpu.memory_space<vmem>>, vector<2x32xf32>
    tpu.vector_store %arg5[%c0_11, %c0_12], %27 {strides = array<i32>} : memref<2x32xf32, #tpu.memory_space<vmem>>, vector<2x32xf32>,
    return
  }
  func.func @transform_0(%arg0: i32) -> (i32, i32, i32) {
    %c0_i32 = arith.constant 0 : i32
    %c0_i32_0 = arith.constant 0 : i32
    %c0_i32_1 = arith.constant 0 : i32
    return %arg0, %c0_i32, %c0_i32_0 : i32, i32, i32
  }
  func.func @transform_1(%arg0: i32) -> (i32, i32) {
    %c0_i32 = arith.constant 0 : i32
    %c0_i32_0 = arith.constant 0 : i32
    return %arg0, %c0_i32 : i32, i32
  }
  func.func @transform_2(%arg0: i32) -> (i32, i32) {
    %c0_i32 = arith.constant 0 : i32
    %c0_i32_0 = arith.constant 0 : i32
    %c0_i32_1 = arith.constant 0 : i32
    return %c0_i32, %c0_i32_0 : i32, i32
  }
  func.func @transform_3(%arg0: i32) -> i32 {
    %c0_i32 = arith.constant 0 : i32
    %c0_i32_0 = arith.constant 0 : i32
    return %c0_i32 : i32
  }
  func.func @transform_4(%arg0: i32) -> (i32, i32) {
    %c0_i32 = arith.constant 0 : i32
    %c0_i32_0 = arith.constant 0 : i32
    return %arg0, %c0_i32 : i32, i32
  }
}

</mosaic_0001>

<llo_original>
// kernel: tpu_custom_call.1
$region0: #{tpu_custom_call.1}
  #allocation0 [shape = 'u32[]', space=smem, size = 0x4, offset = 0x4, fixed_abs, tag = 'smem constant byte address 0x4 - core index']
  #allocation1 [shape = 'u32[144,128]{1,0:T(1,128)}', space=vmem, size = 0x12000, scoped, tag = 'internal scratch']
  #allocation2 [shape = 'f32[1]{0:T(128)S(6)}', space=smem, size = 0x200, scoped, tag = 'scoped memory for tpu_custom_call.1']
  %s0 = inlined_call_operand.hbm [shape: f32[2,8,32], index: 0, kind: input, shape index: {}]
  %s1 = inlined_call_operand.vmem [shape: s32[2,1], index: 1, kind: input, shape index: {}]
  %s2 = inlined_call_operand.vmem [shape: f32[1,32], index: 2, kind: input, shape index: {}]
  %s3 = inlined_call_operand.<no memory space> [shape: f32[1], index: 3, kind: input, shape index: {}]
  %s4 = inlined_call_operand.hbm [shape: f32[2,32], index: 4, kind: output, shape index: {}]
  %s5 = sld [smem:[#allocation0]]
  $region30: #{tpu_custom_call.1} parent=0
    _
  %s7 = ssub.s32 1, %s5
  %s8 = scalar_select 0, %s7, %s5
  %9 = sst [smem:[#allocation2]] %s3
  $region1: #{tpu_custom_call.1} parent=0
    #allocation3 [shape = 'u8[8192]{0}', space=vmem, size = 0x2000, scoped, tag = 'input window, operand 0, single buffered']
    #allocation4 [shape = 's32[1]{0}', space=sflag, size = 0x4, scoped, tag = 'scoped memory for tpu_custom_call.1']
    #allocation5 [shape = 's32[1]{0}', space=sflag, size = 0x4, scoped, tag = 'scoped memory for tpu_custom_call.1']
    #allocation6 [shape = 'u8[1024]{0}', space=vmem, size = 0x400, scoped, tag = 'output window, operand 0, single buffered']
    %10 = vsyncpa [#allocation4], 0
    %11 = vsyncpa [#allocation5], 0
    // Predicated region
    $region2: #{tpu_custom_call.1} parent=1 // pred_check
      _
    $region3: #{tpu_custom_call.1} parent=1 // pred_check_branch
      %13 = sbr.rel (0) target = $region5
    $region4: #{tpu_custom_call.1} parent=1 // pred_region
      %s15 = ssub.s32 256, 256
      %16 = vsyncadd [#allocation4], %s15
      %s17 = sshll.u32 [#allocation3], 4
      %s18 = int_to_ptr.vmem [resolvable:$true] %s17
      %23 = dma.hbm_to_vmem [thread:$0]  %s0, 256, %s18, [#allocation4], 128, 128, 8
    $region5: #{tpu_custom_call.1} parent=1 // pred_fallthru
      _
    // Predicated region
    $region6: #{tpu_custom_call.1} parent=1 // pred_check
      _
    $region7: #{tpu_custom_call.1} parent=1 // pred_check_branch
      %25 = sbr.rel (0) target = $region9
    $region8: #{tpu_custom_call.1} parent=1 // pred_region
      _
    $region9: #{tpu_custom_call.1} parent=1 // pred_fallthru
      _
    // Predicated region
    $region10: #{tpu_custom_call.1} parent=1 // pred_check
      _
    $region11: #{tpu_custom_call.1} parent=1 // pred_check_branch
      %27 = sbr.rel (0) target = $region13
    $region12: #{tpu_custom_call.1} parent=1 // pred_region
      _
    $region13: #{tpu_custom_call.1} parent=1 // pred_fallthru
      _
    // Predicated region
    $region14: #{tpu_custom_call.1} parent=1 // pred_check
      _
    $region15: #{tpu_custom_call.1} parent=1 // pred_check_branch
      %29 = sbr.rel (0) target = $region17
    $region16: #{tpu_custom_call.1} parent=1 // pred_region
      _
    $region17: #{tpu_custom_call.1} parent=1 // pred_fallthru
      _
    // Predicated region
    $region18: #{tpu_custom_call.1} parent=1 // pred_check
      _
    $region19: #{tpu_custom_call.1} parent=1 // pred_check_branch
      %31 = sbr.rel (0) target = $region21
    $region20: #{tpu_custom_call.1} parent=1 // pred_region
      %32 = dma.done [#allocation4], 256
    $region21: #{tpu_custom_call.1} parent=1 // pred_fallthru
      _
    %v33 = vld [vmem:[#allocation3] sm:$0xff]
    %v34 = vld [vmem:[#allocation3 + $0x8] sm:$0xff]
    %v35 = vld [vmem:[%s2] sm:$0x1]
    %s36 = sld [smem:[#allocation2]]
    %v38 = vlaneseq
    %v39 = vshrl.u32 %v38, 7
    %v40 = vsub.s32 0, %v39
    %v41 = vrot.slane %v35, %v40
    %v43 = vmul.f32 %v33, %v41
    %v44 = vmul.f32 %v34, %v41
    %vm45 = vcmask 261120
    %v46 = vsel %vm45, %v43, 0.0
    %47 = vadd.xlane.f32.xlu0 %v46
    %v48 = vpop.xlane.xlu0 %47
    %v49 = vsel %vm45, %v44, 0.0
    %50 = vadd.xlane.f32.xlu0 %v49
    %v51 = vpop.xlane.xlu0 %50
    %v52 = vstv %s36
    %v53 = vadd.f32 %v48, %v52
    %v54 = vadd.f32 %v51, %v52
    %v55 = vlaneseq
    %v56 = vand.u32 %v55, 127
    %v57 = vld [vmem:[%s1] sm:$0x3]
    %58 = vset.pattern.permute.xlu0 0
    %59 = vperm.xlu0 %58, %v57
    %v60 = vpop.permute.xlu0 %59
    %vm61 = vcmp.lt.s32.totalorder %v56, %v60
    %v64 = vlaneseq
    %v65 = vshrl.u32 %v64, 7
    %v66 = vsub.s32 %v56, %v65
    %v67 = vrot.slane %v53, %v66
    %v68 = vlaneseq
    %v69 = vshrl.u32 %v68, 7
    %v70 = vsub.s32 %v56, %v69
    %v71 = vrot.slane %v54, %v70
    %vm72 = vcmask 1041409
    %v73 = vsel %vm72, %v71, %v67
    %v75 = vsel %vm61, %v73, -1e+10
    %vm76 = vcmask 58368
    %v77 = vsel %vm76, %v75, -inf
    %78 = vmax.xlane.f32.xlu0 %v77
    %v79 = vpop.xlane.xlu0 %78
    %v80 = vsub.f32 %v75, %v79
    %v81 = vmul.f32 %v80, 1.442695
    %v82 = vpow.pop %v81
    %v83 = vsel %vm76, %v82, 0.0
    %84 = vadd.xlane.f32.xlu0 %v83
    %v85 = vpop.xlane.xlu0 %84
    %v86 = vrcp.pop %v85
    %v87 = vmul.f32 %v82, %v86
    %v88 = vlaneseq
    %v89 = vshrl.u32 %v88, 7
    %v90 = vsub.s32 0, %v89
    %v91 = vrot.slane %v87, %v90
    %93 = vbcast.lane.b32.xlu0 %v91, 256
    %v94 = vpop.permute.xlu0 %93
    %v95 = vlaneseq
    %v96 = vshrl.u32 %v95, 7
    %v97 = vsub.s32 1, %v96
    %v98 = vrot.slane %v87, %v97
    %100 = vbcast.lane.b32.xlu0 %v98, 256
    %v101 = vpop.permute.xlu0 %100
    %v102 = vmul.f32 %v33, %v94
    %v103 = vmul.f32 %v34, %v101
    %v104 = vsel %vm45, %v102, 0.0
    %v105 = vrot.slane %v104, 4
    %v106 = vadd.f32 %v104, %v105
    %v107 = vrot.slane %v106, 2
    %v108 = vadd.f32 %v106, %v107
    %v109 = vrot.slane %v108, 1
    %v110 = vadd.f32 %v108, %v109
    %v111 = vsel %vm45, %v103, 0.0
    %v112 = vrot.slane %v111, 4
    %v113 = vadd.f32 %v111, %v112
    %v114 = vrot.slane %v113, 2
    %v115 = vadd.f32 %v113, %v114
    %v116 = vrot.slane %v115, 1
    %v117 = vadd.f32 %v115, %v116
    %v120 = vsel %vm72, %v117, %v110
    %vm122 = vcmask 254976
    %123 = vst.msk [vmem:[#allocation6] sm:$0x3] %vm122, %v120
    // Predicated region
    $region22: #{tpu_custom_call.1} parent=1 // pred_check
      _
    $region23: #{tpu_custom_call.1} parent=1 // pred_check_branch
      %125 = sbr.rel (0) target = $region25
    $region24: #{tpu_custom_call.1} parent=1 // pred_region
      %s127 = ssub.s32 32, 32
      %128 = vsyncadd [#allocation5], %s127
      %s130 = sshll.u32 [#allocation6], 4
      %s131 = int_to_ptr.vmem [resolvable:$true] %s130
      %133 = dma.vmem_to_hbm [thread:$0]  %s131, 32, %s4, [#allocation5]
    $region25: #{tpu_custom_call.1} parent=1 // pred_fallthru
      _
    // Predicated region
    $region26: #{tpu_custom_call.1} parent=1 // pred_check
      _
    $region27: #{tpu_custom_call.1} parent=1 // pred_check_branch
      %135 = sbr.rel (0) target = $region29
    $region28: #{tpu_custom_call.1} parent=1 // pred_region
      %136 = dma.done [#allocation5], 32
    $region29: #{tpu_custom_call.1} parent=1 // pred_fallthru
      _
    %137 = vsyncpa [#allocation4], 1
    %138 = vsyncpa [#allocation5], 1

</llo_original>
